<compile_context>
chip_gen: v6e
topology: v6e:2x2x1
jax: 0.10.0
libtpu: 0.0.40
codegen_flags: <defaults>
</compile_context>

<pallas_src>
import functools
import math

import jax
import jax.numpy as jnp
from jax import lax
from jax.experimental import pallas as pl
from jax.experimental.pallas import tpu as pltpu


def _next_pow2(n):
    return 1 << max(0, int(n - 1).bit_length())


def _prev_pow2(n):
    n = max(int(n), 1)
    return 1 << (n.bit_length() - 1)


def _sep_conv_kernel(xm_ref, xh_ref, col_ref, dw_ref, b1_ref, pw_ref, b2_ref,
                     o_ref, *, W, T, pack, Cin, use_mxu):
    # xm_ref : (1, C_pk, T)      main input tile, flat-padded coords [s*T, s*T+T)
    # xh_ref : (1, C_pk, HALO)   right halo,      coords [s*T+T, s*T+T+HALO)
    # col_ref: (1, T) int32      absolute column index (p % W) of each lane
    # dw_ref : (C_pk, 9)         depthwise 3x3 weights (BN1 scale folded), tap=kh*3+kw
    # b1_ref : (C_pk, 1)         folded BN1 bias
    # pw_ref : (Cout_p, Cin)     pointwise weights (BN2 scale folded)
    # b2_ref : (Cout_p, 1)       folded BN2 bias
    # o_ref  : (1, pack, Cout_p, T)
    c_pk = dw_ref.shape[0]
    cout_p = pw_ref.shape[0]

    # One contiguous window [main | halo] along lanes; single tile-sized cast
    # (counted in the VMEM budget used to size T).
    xw = jnp.concatenate([xm_ref[0], xh_ref[0]], axis=-1).astype(jnp.float32)
    dw = dw_ref[...].astype(jnp.float32)                      # (C_pk, 9)

    # Hoisted column indices -> cheap compares; masks kill the row-wraparound
    # of the kw==0 / kw==2 taps in flattened space.
    col = col_ref[...]                                        # (1, T) int32
    not_left = col != 0
    not_right = col != (W - 1)

    # Depthwise 3x3 conv (stride 1, pad 1): 9 static lane-offset slices,
    # per-channel broadcast MACs on the VPU, lane-dense (C_pk, T) tiles.
    acc = jnp.zeros((c_pk, T), jnp.float32)
    for kw in range(3):
        part = jnp.zeros((c_pk, T), jnp.float32)
        for kh in range(3):
            off = kh * W + kw                     # static lane offset of this tap
            tap = kh * 3 + kw
            part = part + xw[:, off:off + T] * dw[:, tap:tap + 1]
        if kw == 0:
            part = jnp.where(not_left, part, 0.0)
        elif kw == 2:
            part = jnp.where(not_right, part, 0.0)
        acc = acc + part

    # BN1 bias + ReLU (BN1 scale already folded into dw).
    y1 = jnp.maximum(acc + b1_ref[...].astype(jnp.float32), 0.0)   # (C_pk, T)

    # Pointwise 1x1 conv per packed image: (Cout_p, Cin) @ (Cin, T).
    pw = pw_ref[...]                                          # f32
    b2 = b2_ref[...].astype(jnp.float32)
    pw_mxu = pw.astype(jnp.bfloat16) if use_mxu else None
    for img in range(pack):                                   # static unroll
        y1i = y1[img * Cin:(img + 1) * Cin, :]
        if use_mxu:
            # bf16 operands + f32 accumulation: native MXU path on all gens.
            y2 = jnp.dot(pw_mxu, y1i.astype(jnp.bfloat16),
                         preferred_element_type=jnp.float32)
        else:
            # Tiny Cin: broadcast MACs on the VPU beat a K=Cin MXU call.
            y2 = jnp.zeros((cout_p, T), jnp.float32)
            for ci in range(Cin):
                y2 = y2 + pw[:, ci:ci + 1] * y1i[ci:ci + 1, :]
        o_ref[0, img] = (y2 + b2).astype(o_ref.dtype)         # dense store


def separable_convolution(x_nchw, dw_w_oihw, bn1, pw_w_oihw, bn2, eps=1e-5):
    """Forward pass of Separable_convolution (inference-mode BN).

    x_nchw    : (N, Cin, H, W)
    dw_w_oihw : (Cin, 1, 3, 3)    conv1.weight (groups=Cin, no bias)
    bn1       : dict gamma/beta/mean/var, shape (Cin,)
    pw_w_oihw : (Cout, Cin, 1, 1) conv2.weight (no bias)
    bn2       : dict gamma/beta/mean/var, shape (Cout,)
    returns   : (N, Cout, H, W)
    """
    N, Cin, H, W = x_nchw.shape
    Cout = pw_w_oihw.shape[0]
    HW = H * W

    # ---- fold inference-mode BN into the conv weights ----
    def fold(bn):
        scale = bn["gamma"] * lax.rsqrt(bn["var"] + eps)
        bias = bn["beta"] - bn["mean"] * scale
        return scale.astype(jnp.float32), bias.astype(jnp.float32)

    s1, b1 = fold(bn1)                      # (Cin,)
    s2, b2 = fold(bn2)                      # (Cout,)

    # ---- sublane packing: several batch images on the sublane axis when Cin<8 ----
    pack = math.gcd(max(1, 8 // Cin), N)
    n_g = N // pack
    c_pk = pack * Cin
    cout_p = -(-Cout // 8) * 8              # Cout padded to multiple of 8 (dense stores)

    # ---- per-generation VMEM budget -> spatial tile size (power of two) ----
    try:
        vmem_cap = pltpu.get_tpu_info().vmem_capacity_bytes
    except Exception:                        # interpret mode / unknown backend
        vmem_cap = 64 * 1024 * 1024          # assume smallest (v7x) VMEM
    vmem_limit = int(min(vmem_cap * 3 // 4, 100 * 1024 * 1024))  # ~48MiB v7x, ~96MiB v5e/v6e
    tile_budget = vmem_limit // 2                                # headroom for pipeline bufs

    in_bytes = x_nchw.dtype.itemsize
    # per-lane bytes: double-buffered input + f32 temporaries (xw/acc/part/y1) per
    # input row, plus double-buffered output + f32 y2 per output row.
    per_lane = c_pk * (2 * in_bytes + 16) + pack * cout_p * (2 * in_bytes + 4)
    halo = max(128, _next_pow2(2 * W + 2))   # 3x3 halo length in flattened coords
    t = min(_next_pow2(HW), 4096, _prev_pow2(tile_budget // max(per_lane, 1)))
    t = max(t, halo, 256)                    # lane-dense; halo must divide/fit the tile
    num_tiles = -(-HW // t)
    hw_pad = num_tiles * t
    halo_stride = t // halo                  # halo | t (both powers of two)

    # ---- folded weights / biases (tiled for packing, padded for density) ----
    dw = (dw_w_oihw[:, 0].reshape(Cin, 9) * s1[:, None]).astype(jnp.float32)
    dw = jnp.tile(dw, (pack, 1))                                  # (c_pk, 9)
    b1c = jnp.tile(b1.reshape(Cin, 1), (pack, 1))                 # (c_pk, 1)
    pw = (pw_w_oihw[:, :, 0, 0] * s2[:, None]).astype(jnp.float32)
    pw = jnp.pad(pw, ((0, cout_p - Cout), (0, 0)))                # (cout_p, Cin)
    b2c = jnp.pad(b2.reshape(Cout, 1), ((0, cout_p - Cout), (0, 0)))

    # ---- flat-padded input: W+1 leading zeros implement pad=1 in both H and W;
    # right pad to (num_tiles+1)*t so every main/halo block read is in-bounds ----
    l_tot = (num_tiles + 1) * t
    x_flat = x_nchw.reshape(n_g, c_pk, HW)       # batch packing is a pure reshape
    x_pad = jnp.pad(x_flat, ((0, 0), (0, 0), (W + 1, l_tot - HW - (W + 1))))

    # Hoisted absolute column index of every flattened output position.
    col = (jnp.arange(hw_pad, dtype=jnp.int32) % W).reshape(1, hw_pad)

    kernel = functools.partial(_sep_conv_kernel, W=W, T=t, pack=pack, Cin=Cin,
                               use_mxu=Cin >= 16)

    out = pl.pallas_call(
        kernel,
        out_shape=jax.ShapeDtypeStruct((n_g, pack, cout_p, hw_pad), x_nchw.dtype),
        grid_spec=pltpu.PrefetchScalarGridSpec(
            num_scalar_prefetch=0,
            grid=(n_g, num_tiles),
            in_specs=[
                # main tile and its right halo: two views of the same padded array
                pl.BlockSpec((1, c_pk, t), lambda n, s: (n, 0, s)),
                pl.BlockSpec((1, c_pk, halo),
                             lambda n, s: (n, 0, (s + 1) * halo_stride)),
                pl.BlockSpec((1, t), lambda n, s: (0, s)),
                pl.BlockSpec((c_pk, 9), lambda n, s: (0, 0)),
                pl.BlockSpec((c_pk, 1), lambda n, s: (0, 0)),
                pl.BlockSpec((cout_p, Cin), lambda n, s: (0, 0)),
                pl.BlockSpec((cout_p, 1), lambda n, s: (0, 0)),
            ],
            out_specs=pl.BlockSpec((1, pack, cout_p, t),
                                   lambda n, s: (n, 0, 0, s)),
        ),
        compiler_params=pltpu.CompilerParams(
            # both axes are independent -> megacore can shard either on v7x
            dimension_semantics=("parallel", "parallel"),
            vmem_limit_bytes=vmem_limit,
        ),
    )(x_pad, x_pad, col, dw, b1c, pw, b2c)

    # Strip channel/lane padding; contiguous reshape back to NCHW (no transpose).
    return out[:, :, :Cout, :HW].reshape(N, Cout, H, W)


def _reference(x_nchw, dw_w_oihw, bn1, pw_w_oihw, bn2, eps=1e-5):
    """Pure-JAX reference (lax conv) for correctness check."""
    Cin = x_nchw.shape[1]

    def bn(x, p):
        scale = (p["gamma"] / jnp.sqrt(p["var"] + eps)).reshape(1, -1, 1, 1)
        bias = (p["beta"] - p["mean"] * p["gamma"] / jnp.sqrt(p["var"] + eps)).reshape(1, -1, 1, 1)
        return x * scale + bias

    dn = ("NCHW", "OIHW", "NCHW")
    y = lax.conv_general_dilated(x_nchw, dw_w_oihw, (1, 1),
                                 ((1, 1), (1, 1)),
                                 feature_group_count=Cin,
                                 dimension_numbers=dn)
    y = jnp.maximum(bn(y, bn1), 0.0)
    y = lax.conv_general_dilated(y, pw_w_oihw, (1, 1), ((0, 0), (0, 0)),
                                 dimension_numbers=dn)
    return bn(y, bn2)


if __name__ == "__main__":
    key = jax.random.PRNGKey(0)
    k_x, k_dw, k_pw, k_g1, k_b1, k_m1, k_v1, k_g2, k_b2, k_m2, k_v2 = jax.random.split(key, 11)

    N, Cin, Cout, H, W = 2, 4, 8, 16, 16

    x = jax.random.normal(k_x, (N, Cin, H, W), jnp.float32)
    dw_w = jax.random.normal(k_dw, (Cin, 1, 3, 3), jnp.float32) * 0.3
    pw_w = jax.random.normal(k_pw, (Cout, Cin, 1, 1), jnp.float32) * 0.3

    bn1 = {
        "gamma": jax.random.uniform(k_g1, (Cin,), jnp.float32, 0.5, 1.5),
        "beta": jax.random.normal(k_b1, (Cin,), jnp.float32) * 0.1,
        "mean": jax.random.normal(k_m1, (Cin,), jnp.float32) * 0.1,
        "var": jax.random.uniform(k_v1, (Cin,), jnp.float32, 0.5, 1.5),
    }
    bn2 = {
        "gamma": jax.random.uniform(k_g2, (Cout,), jnp.float32, 0.5, 1.5),
        "beta": jax.random.normal(k_b2, (Cout,), jnp.float32) * 0.1,
        "mean": jax.random.normal(k_m2, (Cout,), jnp.float32) * 0.1,
        "var": jax.random.uniform(k_v2, (Cout,), jnp.float32, 0.5, 1.5),
    }

    out = separable_convolution(x, dw_w, bn1, pw_w, bn2)
    out = jax.block_until_ready(out)

    ref = jax.block_until_ready(_reference(x, dw_w, bn1, pw_w, bn2))
    assert out.shape == (N, Cout, H, W)
    assert jnp.allclose(out, ref, atol=1e-4, rtol=1e-4), float(jnp.max(jnp.abs(out - ref)))

    print("KERNEL_OK")
</pallas_src>

<mosaic_0001>
module attributes {stable_mosaic.version = 11 : i64} {
  func.func @_sep_conv_kernel(%arg0: i32, %arg1: i32, %arg2: memref<1x8x256xf32, #tpu.memory_space<vmem>>, %arg3: memref<1x8x128xf32, #tpu.memory_space<vmem>>, %arg4: memref<1x256xi32, #tpu.memory_space<vmem>>, %arg5: memref<8x9xf32, #tpu.memory_space<vmem>>, %arg6: memref<8x1xf32, #tpu.memory_space<vmem>>, %arg7: memref<8x4xf32, #tpu.memory_space<vmem>>, %arg8: memref<8x1xf32, #tpu.memory_space<vmem>>, %arg9: memref<1x2x8x256xf32, #tpu.memory_space<vmem>>) attributes {dimension_semantics = [#tpu.dimension_semantics<parallel>, #tpu.dimension_semantics<parallel>], iteration_bounds = array<i64: 1, 1>, scalar_prefetch = 0 : i64, scratch_operands = 0 : i64, tpu.core_type = #tpu.core_type<tc>, window_params = [{transform_indices = @transform_0, window_bounds = array<i64: 1, 8, 256>}, {transform_indices = @transform_1, window_bounds = array<i64: 1, 8, 128>}, {transform_indices = @transform_2, window_bounds = array<i64: 1, 256>}, {pipeline_mode = #tpu.pipeline_mode<synchronous>, transform_indices = @transform_3, window_bounds = array<i64: 8, 9>}, {pipeline_mode = #tpu.pipeline_mode<synchronous>, transform_indices = @transform_4, window_bounds = array<i64: 8, 1>}, {pipeline_mode = #tpu.pipeline_mode<synchronous>, transform_indices = @transform_5, window_bounds = array<i64: 8, 4>}, {pipeline_mode = #tpu.pipeline_mode<synchronous>, transform_indices = @transform_6, window_bounds = array<i64: 8, 1>}, {transform_indices = @transform_7, window_bounds = array<i64: 1, 2, 8, 256>}]} {
    %c0 = arith.constant 0 : index
    %c0_0 = arith.constant 0 : index
    %c0_1 = arith.constant 0 : index
    %0 = vector.load %arg2[%c0, %c0_0, %c0_1] : memref<1x8x256xf32, #tpu.memory_space<vmem>>, vector<1x8x256xf32>
    %1 = vector.shape_cast %0 : vector<1x8x256xf32> to vector<8x256xf32>
    %c0_2 = arith.constant 0 : index
    %c0_3 = arith.constant 0 : index
    %c0_4 = arith.constant 0 : index
    %2 = vector.load %arg3[%c0_2, %c0_3, %c0_4] : memref<1x8x128xf32, #tpu.memory_space<vmem>>, vector<1x8x128xf32>
    %3 = vector.shape_cast %2 : vector<1x8x128xf32> to vector<8x128xf32>
    %4 = tpu.concatenate %1, %3 in 1 : vector<8x256xf32>, vector<8x128xf32> -> vector<8x384xf32>
    %c0_5 = arith.constant 0 : index
    %c0_6 = arith.constant 0 : index
    %5 = vector.load %arg5[%c0_5, %c0_6] : memref<8x9xf32, #tpu.memory_space<vmem>>, vector<8x9xf32>
    %c0_7 = arith.constant 0 : index
    %c0_8 = arith.constant 0 : index
    %6 = vector.load %arg4[%c0_7, %c0_8] : memref<1x256xi32, #tpu.memory_space<vmem>>, vector<1x256xi32>
    %c0_i32 = arith.constant 0 : i32
    %7 = vector.broadcast %c0_i32 : i32 to vector<1x256xi32>
    %8 = arith.cmpi ne, %6, %7 : vector<1x256xi32>
    %c15_i32 = arith.constant 15 : i32
    %9 = vector.broadcast %c15_i32 : i32 to vector<1x256xi32>
    %10 = arith.cmpi ne, %6, %9 : vector<1x256xi32>
    %cst = arith.constant 0.000000e+00 : f32
    %11 = vector.broadcast %cst : f32 to vector<8x256xf32>
    %cst_9 = arith.constant 0.000000e+00 : f32
    %12 = vector.broadcast %cst_9 : f32 to vector<8x256xf32>
    %13 = vector.extract_strided_slice %4 {offsets = [0, 0], sizes = [8, 256], strides = [1, 1]} : vector<8x384xf32> to vector<8x256xf32>
    %14 = vector.extract_strided_slice %5 {offsets = [0, 0], sizes = [8, 1], strides = [1, 1]} : vector<8x9xf32> to vector<8x1xf32>
    %15 = vector.broadcast %14 : vector<8x1xf32> to vector<8x256xf32>
    %16 = arith.mulf %13, %15 : vector<8x256xf32>
    %17 = arith.addf %12, %16 : vector<8x256xf32>
    %18 = vector.extract_strided_slice %4 {offsets = [0, 16], sizes = [8, 256], strides = [1, 1]} : vector<8x384xf32> to vector<8x256xf32>
    %19 = vector.extract_strided_slice %5 {offsets = [0, 3], sizes = [8, 1], strides = [1, 1]} : vector<8x9xf32> to vector<8x1xf32>
    %20 = vector.broadcast %19 : vector<8x1xf32> to vector<8x256xf32>
    %21 = arith.mulf %18, %20 : vector<8x256xf32>
    %22 = arith.addf %17, %21 : vector<8x256xf32>
    %23 = vector.extract_strided_slice %4 {offsets = [0, 32], sizes = [8, 256], strides = [1, 1]} : vector<8x384xf32> to vector<8x256xf32>
    %24 = vector.extract_strided_slice %5 {offsets = [0, 6], sizes = [8, 1], strides = [1, 1]} : vector<8x9xf32> to vector<8x1xf32>
    %25 = vector.broadcast %24 : vector<8x1xf32> to vector<8x256xf32>
    %26 = arith.mulf %23, %25 : vector<8x256xf32>
    %27 = arith.addf %22, %26 : vector<8x256xf32>
    %cst_10 = arith.constant 0.000000e+00 : f32
    %28 = vector.shape_cast %8 : vector<1x256xi1> to vector<1x256xi1>
    %29 = vector.broadcast %28 : vector<1x256xi1> to vector<8x256xi1>
    %30 = vector.broadcast %cst_10 : f32 to vector<8x256xf32>
    %31 = arith.select %29, %27, %30 : vector<8x256xi1>, vector<8x256xf32>
    %32 = arith.addf %11, %31 : vector<8x256xf32>
    %cst_11 = arith.constant 0.000000e+00 : f32
    %33 = vector.broadcast %cst_11 : f32 to vector<8x256xf32>
    %34 = vector.extract_strided_slice %4 {offsets = [0, 1], sizes = [8, 256], strides = [1, 1]} : vector<8x384xf32> to vector<8x256xf32>
    %35 = vector.extract_strided_slice %5 {offsets = [0, 1], sizes = [8, 1], strides = [1, 1]} : vector<8x9xf32> to vector<8x1xf32>
    %36 = vector.broadcast %35 : vector<8x1xf32> to vector<8x256xf32>
    %37 = arith.mulf %34, %36 : vector<8x256xf32>
    %38 = arith.addf %33, %37 : vector<8x256xf32>
    %39 = vector.extract_strided_slice %4 {offsets = [0, 17], sizes = [8, 256], strides = [1, 1]} : vector<8x384xf32> to vector<8x256xf32>
    %40 = vector.extract_strided_slice %5 {offsets = [0, 4], sizes = [8, 1], strides = [1, 1]} : vector<8x9xf32> to vector<8x1xf32>
    %41 = vector.broadcast %40 : vector<8x1xf32> to vector<8x256xf32>
    %42 = arith.mulf %39, %41 : vector<8x256xf32>
    %43 = arith.addf %38, %42 : vector<8x256xf32>
    %44 = vector.extract_strided_slice %4 {offsets = [0, 33], sizes = [8, 256], strides = [1, 1]} : vector<8x384xf32> to vector<8x256xf32>
    %45 = vector.extract_strided_slice %5 {offsets = [0, 7], sizes = [8, 1], strides = [1, 1]} : vector<8x9xf32> to vector<8x1xf32>
    %46 = vector.broadcast %45 : vector<8x1xf32> to vector<8x256xf32>
    %47 = arith.mulf %44, %46 : vector<8x256xf32>
    %48 = arith.addf %43, %47 : vector<8x256xf32>
    %49 = arith.addf %32, %48 : vector<8x256xf32>
    %cst_12 = arith.constant 0.000000e+00 : f32
    %50 = vector.broadcast %cst_12 : f32 to vector<8x256xf32>
    %51 = vector.extract_strided_slice %4 {offsets = [0, 2], sizes = [8, 256], strides = [1, 1]} : vector<8x384xf32> to vector<8x256xf32>
    %52 = vector.extract_strided_slice %5 {offsets = [0, 2], sizes = [8, 1], strides = [1, 1]} : vector<8x9xf32> to vector<8x1xf32>
    %53 = vector.broadcast %52 : vector<8x1xf32> to vector<8x256xf32>
    %54 = arith.mulf %51, %53 : vector<8x256xf32>
    %55 = arith.addf %50, %54 : vector<8x256xf32>
    %56 = vector.extract_strided_slice %4 {offsets = [0, 18], sizes = [8, 256], strides = [1, 1]} : vector<8x384xf32> to vector<8x256xf32>
    %57 = vector.extract_strided_slice %5 {offsets = [0, 5], sizes = [8, 1], strides = [1, 1]} : vector<8x9xf32> to vector<8x1xf32>
    %58 = vector.broadcast %57 : vector<8x1xf32> to vector<8x256xf32>
    %59 = arith.mulf %56, %58 : vector<8x256xf32>
    %60 = arith.addf %55, %59 : vector<8x256xf32>
    %61 = vector.extract_strided_slice %4 {offsets = [0, 34], sizes = [8, 256], strides = [1, 1]} : vector<8x384xf32> to vector<8x256xf32>
    %62 = vector.extract_strided_slice %5 {offsets = [0, 8], sizes = [8, 1], strides = [1, 1]} : vector<8x9xf32> to vector<8x1xf32>
    %63 = vector.broadcast %62 : vector<8x1xf32> to vector<8x256xf32>
    %64 = arith.mulf %61, %63 : vector<8x256xf32>
    %65 = arith.addf %60, %64 : vector<8x256xf32>
    %cst_13 = arith.constant 0.000000e+00 : f32
    %66 = vector.shape_cast %10 : vector<1x256xi1> to vector<1x256xi1>
    %67 = vector.broadcast %66 : vector<1x256xi1> to vector<8x256xi1>
    %68 = vector.broadcast %cst_13 : f32 to vector<8x256xf32>
    %69 = arith.select %67, %65, %68 : vector<8x256xi1>, vector<8x256xf32>
    %70 = arith.addf %49, %69 : vector<8x256xf32>
    %c0_14 = arith.constant 0 : index
    %c0_15 = arith.constant 0 : index
    %71 = vector.load %arg6[%c0_14, %c0_15] : memref<8x1xf32, #tpu.memory_space<vmem>>, vector<8x1xf32>
    %72 = vector.broadcast %71 : vector<8x1xf32> to vector<8x256xf32>
    %73 = arith.addf %70, %72 : vector<8x256xf32>
    %cst_16 = arith.constant 0.000000e+00 : f32
    %74 = vector.broadcast %cst_16 : f32 to vector<8x256xf32>
    %75 = arith.maximumf %73, %74 : vector<8x256xf32>
    %c0_17 = arith.constant 0 : index
    %c0_18 = arith.constant 0 : index
    %76 = vector.load %arg7[%c0_17, %c0_18] : memref<8x4xf32, #tpu.memory_space<vmem>>, vector<8x4xf32>
    %c0_19 = arith.constant 0 : index
    %c0_20 = arith.constant 0 : index
    %77 = vector.load %arg8[%c0_19, %c0_20] : memref<8x1xf32, #tpu.memory_space<vmem>>, vector<8x1xf32>
    %78 = vector.extract_strided_slice %75 {offsets = [0, 0], sizes = [4, 256], strides = [1, 1]} : vector<8x256xf32> to vector<4x256xf32>
    %cst_21 = arith.constant 0.000000e+00 : f32
    %79 = vector.broadcast %cst_21 : f32 to vector<8x256xf32>
    %80 = vector.extract_strided_slice %76 {offsets = [0, 0], sizes = [8, 1], strides = [1, 1]} : vector<8x4xf32> to vector<8x1xf32>
    %81 = vector.extract_strided_slice %78 {offsets = [0, 0], sizes = [1, 256], strides = [1, 1]} : vector<4x256xf32> to vector<1x256xf32>
    %82 = vector.broadcast %80 : vector<8x1xf32> to vector<8x256xf32>
    %83 = vector.broadcast %81 : vector<1x256xf32> to vector<8x256xf32>
    %84 = arith.mulf %82, %83 : vector<8x256xf32>
    %85 = arith.addf %79, %84 : vector<8x256xf32>
    %86 = vector.extract_strided_slice %76 {offsets = [0, 1], sizes = [8, 1], strides = [1, 1]} : vector<8x4xf32> to vector<8x1xf32>
    %87 = vector.extract_strided_slice %78 {offsets = [1, 0], sizes = [1, 256], strides = [1, 1]} : vector<4x256xf32> to vector<1x256xf32>
    %88 = vector.broadcast %86 : vector<8x1xf32> to vector<8x256xf32>
    %89 = vector.broadcast %87 : vector<1x256xf32> to vector<8x256xf32>
    %90 = arith.mulf %88, %89 : vector<8x256xf32>
    %91 = arith.addf %85, %90 : vector<8x256xf32>
    %92 = vector.extract_strided_slice %76 {offsets = [0, 2], sizes = [8, 1], strides = [1, 1]} : vector<8x4xf32> to vector<8x1xf32>
    %93 = vector.extract_strided_slice %78 {offsets = [2, 0], sizes = [1, 256], strides = [1, 1]} : vector<4x256xf32> to vector<1x256xf32>
    %94 = vector.broadcast %92 : vector<8x1xf32> to vector<8x256xf32>
    %95 = vector.broadcast %93 : vector<1x256xf32> to vector<8x256xf32>
    %96 = arith.mulf %94, %95 : vector<8x256xf32>
    %97 = arith.addf %91, %96 : vector<8x256xf32>
    %98 = vector.extract_strided_slice %76 {offsets = [0, 3], sizes = [8, 1], strides = [1, 1]} : vector<8x4xf32> to vector<8x1xf32>
    %99 = vector.extract_strided_slice %78 {offsets = [3, 0], sizes = [1, 256], strides = [1, 1]} : vector<4x256xf32> to vector<1x256xf32>
    %100 = vector.broadcast %98 : vector<8x1xf32> to vector<8x256xf32>
    %101 = vector.broadcast %99 : vector<1x256xf32> to vector<8x256xf32>
    %102 = arith.mulf %100, %101 : vector<8x256xf32>
    %103 = arith.addf %97, %102 : vector<8x256xf32>
    %104 = vector.broadcast %77 : vector<8x1xf32> to vector<8x256xf32>
    %105 = arith.addf %103, %104 : vector<8x256xf32>
    %c0_22 = arith.constant 0 : index
    %c0_23 = arith.constant 0 : index
    %c0_24 = arith.constant 0 : index
    %c0_25 = arith.constant 0 : index
    %106 = vector.load %arg9[%c0_22, %c0_23, %c0_24, %c0_25] : memref<1x2x8x256xf32, #tpu.memory_space<vmem>>, vector<1x1x8x256xf32>
    %107 = vector.shape_cast %106 : vector<1x1x8x256xf32> to vector<8x256xf32>
    %108 = vector.shape_cast %105 : vector<8x256xf32> to vector<1x1x8x256xf32>
    tpu.vector_store %arg9[%c0_22, %c0_23, %c0_24, %c0_25], %108 {strides = array<i32>} : memref<1x2x8x256xf32, #tpu.memory_space<vmem>>, vector<1x1x8x256xf32>,
    %109 = vector.extract_strided_slice %75 {offsets = [4, 0], sizes = [4, 256], strides = [1, 1]} : vector<8x256xf32> to vector<4x256xf32>
    %cst_26 = arith.constant 0.000000e+00 : f32
    %110 = vector.broadcast %cst_26 : f32 to vector<8x256xf32>
    %111 = vector.extract_strided_slice %76 {offsets = [0, 0], sizes = [8, 1], strides = [1, 1]} : vector<8x4xf32> to vector<8x1xf32>
    %112 = vector.extract_strided_slice %109 {offsets = [0, 0], sizes = [1, 256], strides = [1, 1]} : vector<4x256xf32> to vector<1x256xf32>
    %113 = vector.broadcast %111 : vector<8x1xf32> to vector<8x256xf32>
    %114 = vector.broadcast %112 : vector<1x256xf32> to vector<8x256xf32>
    %115 = arith.mulf %113, %114 : vector<8x256xf32>
    %116 = arith.addf %110, %115 : vector<8x256xf32>
    %117 = vector.extract_strided_slice %76 {offsets = [0, 1], sizes = [8, 1], strides = [1, 1]} : vector<8x4xf32> to vector<8x1xf32>
    %118 = vector.extract_strided_slice %109 {offsets = [1, 0], sizes = [1, 256], strides = [1, 1]} : vector<4x256xf32> to vector<1x256xf32>
    %119 = vector.broadcast %117 : vector<8x1xf32> to vector<8x256xf32>
    %120 = vector.broadcast %118 : vector<1x256xf32> to vector<8x256xf32>
    %121 = arith.mulf %119, %120 : vector<8x256xf32>
    %122 = arith.addf %116, %121 : vector<8x256xf32>
    %123 = vector.extract_strided_slice %76 {offsets = [0, 2], sizes = [8, 1], strides = [1, 1]} : vector<8x4xf32> to vector<8x1xf32>
    %124 = vector.extract_strided_slice %109 {offsets = [2, 0], sizes = [1, 256], strides = [1, 1]} : vector<4x256xf32> to vector<1x256xf32>
    %125 = vector.broadcast %123 : vector<8x1xf32> to vector<8x256xf32>
    %126 = vector.broadcast %124 : vector<1x256xf32> to vector<8x256xf32>
    %127 = arith.mulf %125, %126 : vector<8x256xf32>
    %128 = arith.addf %122, %127 : vector<8x256xf32>
    %129 = vector.extract_strided_slice %76 {offsets = [0, 3], sizes = [8, 1], strides = [1, 1]} : vector<8x4xf32> to vector<8x1xf32>
    %130 = vector.extract_strided_slice %109 {offsets = [3, 0], sizes = [1, 256], strides = [1, 1]} : vector<4x256xf32> to vector<1x256xf32>
    %131 = vector.broadcast %129 : vector<8x1xf32> to vector<8x256xf32>
    %132 = vector.broadcast %130 : vector<1x256xf32> to vector<8x256xf32>
    %133 = arith.mulf %131, %132 : vector<8x256xf32>
    %134 = arith.addf %128, %133 : vector<8x256xf32>
    %135 = vector.broadcast %77 : vector<8x1xf32> to vector<8x256xf32>
    %136 = arith.addf %134, %135 : vector<8x256xf32>
    %c0_27 = arith.constant 0 : index
    %c1 = arith.constant 1 : index
    %c0_28 = arith.constant 0 : index
    %c0_29 = arith.constant 0 : index
    %137 = vector.load %arg9[%c0_27, %c1, %c0_28, %c0_29] : memref<1x2x8x256xf32, #tpu.memory_space<vmem>>, vector<1x1x8x256xf32>
    %138 = vector.shape_cast %137 : vector<1x1x8x256xf32> to vector<8x256xf32>
    %139 = vector.shape_cast %136 : vector<8x256xf32> to vector<1x1x8x256xf32>
    tpu.vector_store %arg9[%c0_27, %c1, %c0_28, %c0_29], %139 {strides = array<i32>} : memref<1x2x8x256xf32, #tpu.memory_space<vmem>>, vector<1x1x8x256xf32>,
    return
  }
  func.func @transform_0(%arg0: i32, %arg1: i32) -> (i32, i32, i32) {
    %c0_i32 = arith.constant 0 : i32
    %c0_i32_0 = arith.constant 0 : i32
    return %arg0, %c0_i32, %arg1 : i32, i32, i32
  }
  func.func @transform_1(%arg0: i32, %arg1: i32) -> (i32, i32, i32) {
    %c1_i32 = arith.constant 1 : i32
    %0 = arith.addi %arg1, %c1_i32 : i32
    %c2_i32 = arith.constant 2 : i32
    %1 = arith.muli %0, %c2_i32 : i32
    %c0_i32 = arith.constant 0 : i32
    %c0_i32_0 = arith.constant 0 : i32
    return %arg0, %c0_i32, %1 : i32, i32, i32
  }
  func.func @transform_2(%arg0: i32, %arg1: i32) -> (i32, i32) {
    %c0_i32 = arith.constant 0 : i32
    %c0_i32_0 = arith.constant 0 : i32
    return %c0_i32, %arg1 : i32, i32
  }
  func.func @transform_3(%arg0: i32, %arg1: i32) -> (i32, i32) {
    %c0_i32 = arith.constant 0 : i32
    %c0_i32_0 = arith.constant 0 : i32
    %c0_i32_1 = arith.constant 0 : i32
    return %c0_i32, %c0_i32_0 : i32, i32
  }
  func.func @transform_4(%arg0: i32, %arg1: i32) -> (i32, i32) {
    %c0_i32 = arith.constant 0 : i32
    %c0_i32_0 = arith.constant 0 : i32
    %c0_i32_1 = arith.constant 0 : i32
    return %c0_i32, %c0_i32_0 : i32, i32
  }
  func.func @transform_5(%arg0: i32, %arg1: i32) -> (i32, i32) {
    %c0_i32 = arith.constant 0 : i32
    %c0_i32_0 = arith.constant 0 : i32
    %c0_i32_1 = arith.constant 0 : i32
    return %c0_i32, %c0_i32_0 : i32, i32
  }
  func.func @transform_6(%arg0: i32, %arg1: i32) -> (i32, i32) {
    %c0_i32 = arith.constant 0 : i32
    %c0_i32_0 = arith.constant 0 : i32
    %c0_i32_1 = arith.constant 0 : i32
    return %c0_i32, %c0_i32_0 : i32, i32
  }
  func.func @transform_7(%arg0: i32, %arg1: i32) -> (i32, i32, i32, i32) {
    %c0_i32 = arith.constant 0 : i32
    %c0_i32_0 = arith.constant 0 : i32
    %c0_i32_1 = arith.constant 0 : i32
    return %arg0, %c0_i32, %c0_i32_0, %arg1 : i32, i32, i32, i32
  }
}

</mosaic_0001>

<llo_original>
// kernel: tpu_custom_call.1
$region0: #{tpu_custom_call.1}
  #allocation0 [shape = 'u32[]', space=smem, size = 0x4, offset = 0x4, fixed_abs, tag = 'smem constant byte address 0x4 - core index']
  #allocation1 [shape = 'u32[144,128]{1,0:T(1,128)}', space=vmem, size = 0x12000, scoped, tag = 'internal scratch']
  %s0 = inlined_call_operand.hbm [shape: f32[1,8,512], index: 0, kind: input, shape index: {}]
  %s1 = inlined_call_operand.hbm [shape: f32[1,8,512], index: 1, kind: input, shape index: {}]
  %s2 = inlined_call_operand.vmem [shape: s32[1,256], index: 2, kind: input, shape index: {}]
  %s3 = inlined_call_operand.vmem [shape: f32[8,9], index: 3, kind: input, shape index: {}]
  %s4 = inlined_call_operand.vmem [shape: f32[8,1], index: 4, kind: input, shape index: {}]
  %s5 = inlined_call_operand.vmem [shape: f32[8,4], index: 5, kind: input, shape index: {}]
  %s6 = inlined_call_operand.vmem [shape: f32[8,1], index: 6, kind: input, shape index: {}]
  %s7 = inlined_call_operand.hbm [shape: f32[1,2,8,256], index: 7, kind: output, shape index: {}]
  %s8 = sld [smem:[#allocation0]]
  $region46: #{tpu_custom_call.1} parent=0
    _
  %s10 = ssub.s32 1, %s8
  %s11 = scalar_select 0, %s10, %s8
  $region1: #{tpu_custom_call.1} parent=0
    #allocation2 [shape = 'u8[8192]{0}', space=vmem, size = 0x2000, scoped, tag = 'input window, operand 0, single buffered']
    #allocation3 [shape = 's32[1]{0}', space=sflag, size = 0x4, scoped, tag = 'scoped memory for tpu_custom_call.1']
    #allocation4 [shape = 's32[1]{0}', space=sflag, size = 0x4, scoped, tag = 'scoped memory for tpu_custom_call.1']
    #allocation5 [shape = 'u8[4096]{0}', space=vmem, size = 0x1000, scoped, tag = 'input window, operand 1, single buffered']
    #allocation6 [shape = 's32[1]{0}', space=sflag, size = 0x4, scoped, tag = 'scoped memory for tpu_custom_call.1']
    #allocation7 [shape = 'u8[16384]{0}', space=vmem, size = 0x4000, scoped, tag = 'output window, operand 0, single buffered']
    %12 = vsyncpa [#allocation3], 0
    %13 = vsyncpa [#allocation6], 0
    %14 = vsyncpa [#allocation4], 0
    // Predicated region
    $region2: #{tpu_custom_call.1} parent=1 // pred_check
      _
    $region3: #{tpu_custom_call.1} parent=1 // pred_check_branch
      %16 = sbr.rel (0) target = $region5
    $region4: #{tpu_custom_call.1} parent=1 // pred_region
      %s18 = ssub.s32 256, 256
      %19 = vsyncadd [#allocation3], %s18
      %s21 = sshll.u32 [#allocation2], 4
      %s22 = int_to_ptr.vmem [resolvable:$true] %s21
      %24 = dma.hbm_to_vmem [thread:$0]  %s0, 256, %s22, [#allocation3]
    $region5: #{tpu_custom_call.1} parent=1 // pred_fallthru
      _
    // Predicated region
    $region6: #{tpu_custom_call.1} parent=1 // pred_check
      _
    $region7: #{tpu_custom_call.1} parent=1 // pred_check_branch
      %26 = sbr.rel (0) target = $region9
    $region8: #{tpu_custom_call.1} parent=1 // pred_region
      %s27 = sadd.s32 0, 1
      %s28 = smul.u32 %s27, 2
      %s30 = ssub.s32 128, 128
      %31 = vsyncadd [#allocation6], %s30
      %s32 = smul.addr %s28, 128
      %s33 = scalar_lea.hbm %s1, %s32
      %s35 = sshll.u32 [#allocation5], 4
      %s36 = int_to_ptr.vmem [resolvable:$true] %s35
      %38 = dma.hbm_to_vmem [thread:$0]  %s33, 128, %s36, [#allocation6]
    $region9: #{tpu_custom_call.1} parent=1 // pred_fallthru
      _
    // Predicated region
    $region10: #{tpu_custom_call.1} parent=1 // pred_check
      _
    $region11: #{tpu_custom_call.1} parent=1 // pred_check_branch
      %40 = sbr.rel (0) target = $region13
    $region12: #{tpu_custom_call.1} parent=1 // pred_region
      _
    $region13: #{tpu_custom_call.1} parent=1 // pred_fallthru
      _
    // Predicated region
    $region14: #{tpu_custom_call.1} parent=1 // pred_check
      _
    $region15: #{tpu_custom_call.1} parent=1 // pred_check_branch
      %42 = sbr.rel (0) target = $region17
    $region16: #{tpu_custom_call.1} parent=1 // pred_region
      _
    $region17: #{tpu_custom_call.1} parent=1 // pred_fallthru
      _
    // Predicated region
    $region18: #{tpu_custom_call.1} parent=1 // pred_check
      _
    $region19: #{tpu_custom_call.1} parent=1 // pred_check_branch
      %44 = sbr.rel (0) target = $region21
    $region20: #{tpu_custom_call.1} parent=1 // pred_region
      _
    $region21: #{tpu_custom_call.1} parent=1 // pred_fallthru
      _
    // Predicated region
    $region22: #{tpu_custom_call.1} parent=1 // pred_check
      _
    $region23: #{tpu_custom_call.1} parent=1 // pred_check_branch
      %46 = sbr.rel (0) target = $region25
    $region24: #{tpu_custom_call.1} parent=1 // pred_region
      _
    $region25: #{tpu_custom_call.1} parent=1 // pred_fallthru
      _
    // Predicated region
    $region26: #{tpu_custom_call.1} parent=1 // pred_check
      _
    $region27: #{tpu_custom_call.1} parent=1 // pred_check_branch
      %48 = sbr.rel (0) target = $region29
    $region28: #{tpu_custom_call.1} parent=1 // pred_region
      _
    $region29: #{tpu_custom_call.1} parent=1 // pred_fallthru
      _
    // Predicated region
    $region30: #{tpu_custom_call.1} parent=1 // pred_check
      _
    $region31: #{tpu_custom_call.1} parent=1 // pred_check_branch
      %50 = sbr.rel (0) target = $region33
    $region32: #{tpu_custom_call.1} parent=1 // pred_region
      %51 = dma.done [#allocation3], 256
    $region33: #{tpu_custom_call.1} parent=1 // pred_fallthru
      _
    // Predicated region
    $region34: #{tpu_custom_call.1} parent=1 // pred_check
      _
    $region35: #{tpu_custom_call.1} parent=1 // pred_check_branch
      %53 = sbr.rel (0) target = $region37
    $region36: #{tpu_custom_call.1} parent=1 // pred_region
      %54 = dma.done [#allocation6], 128
    $region37: #{tpu_custom_call.1} parent=1 // pred_fallthru
      _
    %s55 = sadd.s32 0, 1
    %s56 = smul.u32 %s55, 2
    %v57 = vld [vmem:[#allocation2] sm:$0xff]
    %v58 = vld [vmem:[#allocation2 + $0x8] sm:$0xff]
    %v59 = vld [vmem:[#allocation5] sm:$0xff]
    %v60 = vld [vmem:[%s3] sm:$0xff]
    %v61 = vld [vmem:[%s2] sm:$0x3]
    %vm62 = vcmp.ne.s32.totalorder %v61, 0
    %vm63 = vcmp.ne.s32.totalorder %v61, 15
    %65 = vset.pattern.permute.xlu0 0
    %66 = vperm.xlu0 %65, %v60
    %v67 = vpop.permute.xlu0 %66
    %v69 = vmul.f32 %v57, %v67
    %v70 = vmul.f32 %v58, %v67
    %v71 = vadd.f32 %v69, 0.0
    %v72 = vadd.f32 %v70, 0.0
    %73 = vset.pattern.permute.xlu0 3
    %74 = vperm.xlu0 %73, %v60
    %v75 = vpop.permute.xlu0 %74
    %v77 = vmul.f32 %v57, %v75
    %v78 = vmul.f32 %v58, %v75
    %v79 = vmul.f32 %v59, %v75
    %83 = vrot.lane.b32.xlu0 %v77, 112
    %v84 = vpop.permute.xlu0 %83
    %85 = vrot.lane.b32.xlu0 %v78, 112
    %v86 = vpop.permute.xlu0 %85
    %87 = vrot.lane.b32.xlu0 %v79, 112
    %v88 = vpop.permute.xlu0 %87
    %vm89 = vcmask 916480
    %v90 = vsel %vm89, %v84, %v86
    %v91 = vsel %vm89, %v86, %v88
    %v94 = vadd.f32 %v71, %v90
    %v95 = vadd.f32 %v72, %v91
    %96 = vset.pattern.permute.xlu0 6
    %97 = vperm.xlu0 %96, %v60
    %v98 = vpop.permute.xlu0 %97
    %v100 = vmul.f32 %v57, %v98
    %v101 = vmul.f32 %v58, %v98
    %v102 = vmul.f32 %v59, %v98
    %106 = vrot.lane.b32.xlu0 %v100, 96
    %v107 = vpop.permute.xlu0 %106
    %108 = vrot.lane.b32.xlu0 %v101, 96
    %v109 = vpop.permute.xlu0 %108
    %110 = vrot.lane.b32.xlu0 %v102, 96
    %v111 = vpop.permute.xlu0 %110
    %vm112 = vcmask 785408
    %v113 = vsel %vm112, %v107, %v109
    %v114 = vsel %vm112, %v109, %v111
    %v117 = vadd.f32 %v94, %v113
    %v118 = vadd.f32 %v95, %v114
    %v119 = vsel %vm62, 1, 0
    %v120 = vlaneseq
    %v121 = vshrl.u32 %v120, 7
    %v122 = vsub.s32 0, %v121
    %v123 = vrot.slane %v119, %v122
    %v124 = vlaneseq
    %v125 = vshrl.u32 %v124, 7
    %v126 = vsub.s32 1, %v125
    %v127 = vrot.slane %v119, %v126
    %vm128 = vcmp.eq.s32.totalorder %v123, 1
    %vm129 = vcmp.eq.s32.totalorder %v127, 1
    %v130 = vsel %vm128, %v117, 0.0
    %v131 = vsel %vm129, %v118, 0.0
    %v132 = vadd.f32 %v130, 0.0
    %v133 = vadd.f32 %v131, 0.0
    %134 = vset.pattern.permute.xlu0 1
    %135 = vperm.xlu0 %134, %v60
    %v136 = vpop.permute.xlu0 %135
    %v138 = vmul.f32 %v57, %v136
    %v139 = vmul.f32 %v58, %v136
    %v140 = vmul.f32 %v59, %v136
    %v141 = vadd.f32 %v138, 0.0
    %v142 = vadd.f32 %v139, 0.0
    %v143 = vadd.f32 %v140, 0.0
    %144 = vset.pattern.permute.xlu0 4
    %145 = vperm.xlu0 %144, %v60
    %v146 = vpop.permute.xlu0 %145
    %v148 = vmul.f32 %v57, %v146
    %v149 = vmul.f32 %v58, %v146
    %v150 = vmul.f32 %v59, %v146
    %154 = vrot.lane.b32.xlu0 %v148, 112
    %v155 = vpop.permute.xlu0 %154
    %156 = vrot.lane.b32.xlu0 %v149, 112
    %v157 = vpop.permute.xlu0 %156
    %158 = vrot.lane.b32.xlu0 %v150, 112
    %v159 = vpop.permute.xlu0 %158
    %v160 = vsel %vm89, %v155, %v157
    %v161 = vsel %vm89, %v157, %v159
    %v165 = vadd.f32 %v141, %v160
    %v166 = vadd.f32 %v142, %v161
    %v167 = vadd.f32 %v143, %v159
    %168 = vset.pattern.permute.xlu0 7
    %169 = vperm.xlu0 %168, %v60
    %v170 = vpop.permute.xlu0 %169
    %v172 = vmul.f32 %v57, %v170
    %v173 = vmul.f32 %v58, %v170
    %v174 = vmul.f32 %v59, %v170
    %178 = vrot.lane.b32.xlu0 %v172, 96
    %v179 = vpop.permute.xlu0 %178
    %180 = vrot.lane.b32.xlu0 %v173, 96
    %v181 = vpop.permute.xlu0 %180
    %182 = vrot.lane.b32.xlu0 %v174, 96
    %v183 = vpop.permute.xlu0 %182
    %v184 = vsel %vm112, %v179, %v181
    %v185 = vsel %vm112, %v181, %v183
    %v189 = vadd.f32 %v165, %v184
    %v190 = vadd.f32 %v166, %v185
    %v191 = vadd.f32 %v167, %v183
    %195 = vrot.lane.b32.xlu0 %v189, 127
    %v196 = vpop.permute.xlu0 %195
    %197 = vrot.lane.b32.xlu0 %v190, 127
    %v198 = vpop.permute.xlu0 %197
    %199 = vrot.lane.b32.xlu0 %v191, 127
    %v200 = vpop.permute.xlu0 %199
    %vm201 = vcmask 1039360
    %v202 = vsel %vm201, %v196, %v198
    %v203 = vsel %vm201, %v198, %v200
    %v206 = vadd.f32 %v132, %v202
    %v207 = vadd.f32 %v133, %v203
    %208 = vset.pattern.permute.xlu0 2
    %209 = vperm.xlu0 %208, %v60
    %v210 = vpop.permute.xlu0 %209
    %v212 = vmul.f32 %v57, %v210
    %v213 = vmul.f32 %v58, %v210
    %v214 = vmul.f32 %v59, %v210
    %v215 = vadd.f32 %v212, 0.0
    %v216 = vadd.f32 %v213, 0.0
    %v217 = vadd.f32 %v214, 0.0
    %218 = vset.pattern.permute.xlu0 5
    %219 = vperm.xlu0 %218, %v60
    %v220 = vpop.permute.xlu0 %219
    %v222 = vmul.f32 %v57, %v220
    %v223 = vmul.f32 %v58, %v220
    %v224 = vmul.f32 %v59, %v220
    %228 = vrot.lane.b32.xlu0 %v222, 112
    %v229 = vpop.permute.xlu0 %228
    %230 = vrot.lane.b32.xlu0 %v223, 112
    %v231 = vpop.permute.xlu0 %230
    %232 = vrot.lane.b32.xlu0 %v224, 112
    %v233 = vpop.permute.xlu0 %232
    %v234 = vsel %vm89, %v229, %v231
    %v235 = vsel %vm89, %v231, %v233
    %v239 = vadd.f32 %v215, %v234
    %v240 = vadd.f32 %v216, %v235
    %v241 = vadd.f32 %v217, %v233
    %242 = vset.pattern.permute.xlu0 8
    %243 = vperm.xlu0 %242, %v60
    %v244 = vpop.permute.xlu0 %243
    %v246 = vmul.f32 %v57, %v244
    %v247 = vmul.f32 %v58, %v244
    %v248 = vmul.f32 %v59, %v244
    %252 = vrot.lane.b32.xlu0 %v246, 96
    %v253 = vpop.permute.xlu0 %252
    %254 = vrot.lane.b32.xlu0 %v247, 96
    %v255 = vpop.permute.xlu0 %254
    %256 = vrot.lane.b32.xlu0 %v248, 96
    %v257 = vpop.permute.xlu0 %256
    %v258 = vsel %vm112, %v253, %v255
    %v259 = vsel %vm112, %v255, %v257
    %v263 = vadd.f32 %v239, %v258
    %v264 = vadd.f32 %v240, %v259
    %v265 = vadd.f32 %v241, %v257
    %v266 = vsel %vm63, 1, 0
    %v267 = vlaneseq
    %v268 = vshrl.u32 %v267, 7
    %v269 = vsub.s32 0, %v268
    %v270 = vrot.slane %v266, %v269
    %v271 = vlaneseq
    %v272 = vshrl.u32 %v271, 7
    %v273 = vsub.s32 1, %v272
    %v274 = vrot.slane %v266, %v273
    %vm275 = vcmp.eq.s32.totalorder %v270, 1
    %vm276 = vcmp.eq.s32.totalorder %v274, 1
    %280 = vrot.lane.b32.xlu0 %v263, 126
    %v281 = vpop.permute.xlu0 %280
    %282 = vrot.lane.b32.xlu0 %v264, 126
    %v283 = vpop.permute.xlu0 %282
    %284 = vrot.lane.b32.xlu0 %v265, 126
    %v285 = vpop.permute.xlu0 %284
    %vm286 = vcmask 1031168
    %v287 = vsel %vm286, %v281, %v283
    %v288 = vsel %vm286, %v283, %v285
    %v291 = vsel %vm275, %v287, 0.0
    %v292 = vsel %vm276, %v288, 0.0
    %v293 = vadd.f32 %v206, %v291
    %v294 = vadd.f32 %v207, %v292
    %v295 = vld [vmem:[%s4] sm:$0xff]
    %297 = vset.pattern.permute.xlu0 0
    %298 = vperm.xlu0 %297, %v295
    %v299 = vpop.permute.xlu0 %298
    %v301 = vadd.f32 %v293, %v299
    %v302 = vadd.f32 %v294, %v299
    %v303 = vmax.f32 %v301, 0.0
    %v304 = vmax.f32 %v302, 0.0
    %v305 = vld [vmem:[%s5] sm:$0xff]
    %v306 = vld [vmem:[%s6] sm:$0xff]
    %308 = vset.pattern.permute.xlu0 0
    %309 = vperm.xlu0 %308, %v305
    %v310 = vpop.permute.xlu0 %309
    %v312 = vlaneseq
    %v313 = vshrl.u32 %v312, 7
    %v314 = vsub.s32 0, %v313
    %v315 = vrot.slane %v303, %v314
    %v316 = vlaneseq
    %v317 = vshrl.u32 %v316, 7
    %v318 = vsub.s32 0, %v317
    %v319 = vrot.slane %v304, %v318
    %v320 = vmul.f32 %v310, %v315
    %v321 = vmul.f32 %v310, %v319
    %v322 = vadd.f32 %v320, 0.0
    %v323 = vadd.f32 %v321, 0.0
    %324 = vset.pattern.permute.xlu0 1
    %325 = vperm.xlu0 %324, %v305
    %v326 = vpop.permute.xlu0 %325
    %v328 = vlaneseq
    %v329 = vshrl.u32 %v328, 7
    %v330 = vsub.s32 1, %v329
    %v331 = vrot.slane %v303, %v330
    %v332 = vlaneseq
    %v333 = vshrl.u32 %v332, 7
    %v334 = vsub.s32 1, %v333
    %v335 = vrot.slane %v304, %v334
    %v336 = vmul.f32 %v326, %v331
    %v337 = vmul.f32 %v326, %v335
    %v338 = vadd.f32 %v322, %v336
    %v339 = vadd.f32 %v323, %v337
    %340 = vset.pattern.permute.xlu0 2
    %341 = vperm.xlu0 %340, %v305
    %v342 = vpop.permute.xlu0 %341
    %v344 = vlaneseq
    %v345 = vshrl.u32 %v344, 7
    %v346 = vsub.s32 2, %v345
    %v347 = vrot.slane %v303, %v346
    %v348 = vlaneseq
    %v349 = vshrl.u32 %v348, 7
    %v350 = vsub.s32 2, %v349
    %v351 = vrot.slane %v304, %v350
    %v352 = vmul.f32 %v342, %v347
    %v353 = vmul.f32 %v342, %v351
    %v354 = vadd.f32 %v338, %v352
    %v355 = vadd.f32 %v339, %v353
    %356 = vset.pattern.permute.xlu0 3
    %357 = vperm.xlu0 %356, %v305
    %v358 = vpop.permute.xlu0 %357
    %v360 = vlaneseq
    %v361 = vshrl.u32 %v360, 7
    %v362 = vsub.s32 3, %v361
    %v363 = vrot.slane %v303, %v362
    %v364 = vlaneseq
    %v365 = vshrl.u32 %v364, 7
    %v366 = vsub.s32 3, %v365
    %v367 = vrot.slane %v304, %v366
    %v368 = vmul.f32 %v358, %v363
    %v369 = vmul.f32 %v358, %v367
    %v370 = vadd.f32 %v354, %v368
    %v371 = vadd.f32 %v355, %v369
    %373 = vset.pattern.permute.xlu0 0
    %374 = vperm.xlu0 %373, %v306
    %v375 = vpop.permute.xlu0 %374
    %v377 = vadd.f32 %v370, %v375
    %v378 = vadd.f32 %v371, %v375
    %379 = vst [vmem:[#allocation7] sm:$0xff] %v377
    %380 = vst [vmem:[#allocation7 + $0x8] sm:$0xff] %v378
    %v381 = vlaneseq
    %v382 = vshrl.u32 %v381, 7
    %v383 = vsub.s32 4, %v382
    %v384 = vrot.slane %v303, %v383
    %v385 = vlaneseq
    %v386 = vshrl.u32 %v385, 7
    %v387 = vsub.s32 4, %v386
    %v388 = vrot.slane %v304, %v387
    %v389 = vmul.f32 %v310, %v384
    %v390 = vmul.f32 %v310, %v388
    %v391 = vadd.f32 %v389, 0.0
    %v392 = vadd.f32 %v390, 0.0
    %v393 = vlaneseq
    %v394 = vshrl.u32 %v393, 7
    %v395 = vsub.s32 5, %v394
    %v396 = vrot.slane %v303, %v395
    %v397 = vlaneseq
    %v398 = vshrl.u32 %v397, 7
    %v399 = vsub.s32 5, %v398
    %v400 = vrot.slane %v304, %v399
    %v401 = vmul.f32 %v326, %v396
    %v402 = vmul.f32 %v326, %v400
    %v403 = vadd.f32 %v391, %v401
    %v404 = vadd.f32 %v392, %v402
    %v405 = vlaneseq
    %v406 = vshrl.u32 %v405, 7
    %v407 = vsub.s32 6, %v406
    %v408 = vrot.slane %v303, %v407
    %v409 = vlaneseq
    %v410 = vshrl.u32 %v409, 7
    %v411 = vsub.s32 6, %v410
    %v412 = vrot.slane %v304, %v411
    %v413 = vmul.f32 %v342, %v408
    %v414 = vmul.f32 %v342, %v412
    %v415 = vadd.f32 %v403, %v413
    %v416 = vadd.f32 %v404, %v414
    %v417 = vlaneseq
    %v418 = vshrl.u32 %v417, 7
    %v419 = vsub.s32 7, %v418
    %v420 = vrot.slane %v303, %v419
    %v421 = vlaneseq
    %v422 = vshrl.u32 %v421, 7
    %v423 = vsub.s32 7, %v422
    %v424 = vrot.slane %v304, %v423
    %v425 = vmul.f32 %v358, %v420
    %v426 = vmul.f32 %v358, %v424
    %v427 = vadd.f32 %v415, %v425
    %v428 = vadd.f32 %v416, %v426
    %v429 = vadd.f32 %v427, %v375
    %v430 = vadd.f32 %v428, %v375
    %s431 = scalar_lea.vmem [#allocation7], 16
    %432 = vst [vmem:[%s431] sm:$0xff] %v429
    %433 = vst [vmem:[%s431 + $0x8] sm:$0xff] %v430
    // Predicated region
    $region38: #{tpu_custom_call.1} parent=1 // pred_check
      _
    $region39: #{tpu_custom_call.1} parent=1 // pred_check_branch
      %435 = sbr.rel (0) target = $region41
    $region40: #{tpu_custom_call.1} parent=1 // pred_region
      %s437 = ssub.s32 512, 512
      %438 = vsyncadd [#allocation4], %s437
      %s439 = sshll.u32 [#allocation7], 4
      %s440 = int_to_ptr.vmem [resolvable:$true] %s439
      %445 = dma.vmem_to_hbm [thread:$0]  %s440, 512, %s7, [#allocation4], 256, 256, 16
    $region41: #{tpu_custom_call.1} parent=1 // pred_fallthru
      _
    // Predicated region
    $region42: #{tpu_custom_call.1} parent=1 // pred_check
      _
    $region43: #{tpu_custom_call.1} parent=1 // pred_check_branch
      %447 = sbr.rel (0) target = $region45
    $region44: #{tpu_custom_call.1} parent=1 // pred_region
      %448 = dma.done [#allocation4], 512
    $region45: #{tpu_custom_call.1} parent=1 // pred_fallthru
      _
    %449 = vsyncpa [#allocation3], 1
    %450 = vsyncpa [#allocation6], 1
    %451 = vsyncpa [#allocation4], 1

</llo_original>
